<compile_context>
chip_gen: v7x
topology: tpu7x:2x2x1
jax: 0.10.0
libtpu: 0.0.40
codegen_flags: <defaults>
</compile_context>

<pallas_src>
import math

import jax
import jax.numpy as jnp
from jax import lax
from jax.experimental import pallas as pl
from jax.experimental.pallas import tpu as pltpu


def _bilinear_kernel(z_row_ref, z_col_ref, wt_ref, blin_ref, bias_ref, out_ref, h_ref):
    # z_row_ref: (TM, D)  row tile of z (compute dtype), indexed by i
    # z_col_ref: (TN, D)  col tile of z (compute dtype), indexed by j
    # wt_ref:    (D, D)   pre-transposed, pre-scaled Linear weight (compute dtype)
    # blin_ref:  (1, D)   pre-scaled Linear bias (f32)
    # bias_ref:  (1,)     scalar contact bias, SMEM (f32)
    # out_ref:   (TM, TN) output tile
    # h_ref:     (TM, D)  scratch holding h_i, reused across the j axis
    j = pl.program_id(2)

    @pl.when(j == 0)
    def _():
        # h_i = z_i @ (W^T / scale) + b_lin / scale  — computed once per (b, i)
        h = jnp.dot(z_row_ref[...], wt_ref[...], preferred_element_type=jnp.float32)
        h = h + blin_ref[...]
        h_ref[...] = h.astype(h_ref.dtype)

    # out tile = h_i @ z_j^T + bias  (NT contraction: contract dim 1 of both operands)
    s = lax.dot_general(
        h_ref[...], z_col_ref[...],
        dimension_numbers=(((1,), (1,)), ((), ())),
        preferred_element_type=jnp.float32,
    )
    out_ref[...] = (s + bias_ref[0]).astype(out_ref.dtype)


def _round_up(x, m):
    return ((x + m - 1) // m) * m


def bilinear_contact_map(z, w, b_lin, bias, *, hidden_dim=1000, max_tile=256,
                         compute_dtype=jnp.bfloat16, out_dtype=None):
    """z: (B, L, D); w: (D, D) torch nn.Linear layout (out, in); b_lin: (D,); bias: scalar.

    Returns s = (z @ W^T + b_lin) @ z^T / sqrt(hidden_dim) + bias, shape (B, L, L).
    """
    B, L, D = z.shape
    out_dtype = z.dtype if out_dtype is None else out_dtype
    scale = 1.0 / math.sqrt(float(hidden_dim))

    # Fold 1/sqrt(hidden_dim) into the Linear params and pre-transpose the weight so the
    # kernel does a plain z @ W_t (no in-kernel transposes).
    wt_s = (w.T * scale).astype(compute_dtype)                   # (D_in, D_out), scaled
    b_s = (b_lin.astype(jnp.float32) * scale).reshape(1, D)      # (1, D), f32
    bias1 = jnp.asarray(bias, jnp.float32).reshape(1)            # (1,), scalar in SMEM

    # Pad L to a lane-dense multiple of 128 and choose square tiles that divide it.
    lp = _round_up(L, 128)
    tm = tn = min(max_tile, lp)               # multiple of 128 by construction
    L_pad = _round_up(L, tm)
    z_c = z
    if L_pad != L:
        z_c = jnp.pad(z_c, ((0, 0), (0, L_pad - L), (0, 0)))
    z_c = z_c.astype(compute_dtype)

    grid = (B, L_pad // tm, L_pad // tn)

    # Explicit VMEM budget: double-buffered tiles + resident weight + h scratch, with headroom.
    cbytes = jnp.dtype(compute_dtype).itemsize
    obytes = jnp.dtype(out_dtype).itemsize
    est = (2 * (tm * D + tn * D + D * D) * cbytes
           + 2 * D * 4
           + 2 * tm * tn * obytes
           + tm * D * cbytes)
    vmem_limit = int(min(max(2 * est + (4 << 20), 16 << 20), 64 << 20))

    out = pl.pallas_call(
        _bilinear_kernel,
        out_shape=jax.ShapeDtypeStruct((B, L_pad, L_pad), out_dtype),
        grid_spec=pltpu.PrefetchScalarGridSpec(
            num_scalar_prefetch=0,
            grid=grid,
            in_specs=[
                pl.BlockSpec((None, tm, D), lambda b, i, j: (b, i, 0)),   # z row tile
                pl.BlockSpec((None, tn, D), lambda b, i, j: (b, j, 0)),   # z col tile
                pl.BlockSpec((D, D), lambda b, i, j: (0, 0)),             # scaled W^T
                pl.BlockSpec((1, D), lambda b, i, j: (0, 0)),             # scaled Linear bias
                pl.BlockSpec(memory_space=pltpu.MemorySpace.SMEM),        # scalar contact bias
            ],
            out_specs=pl.BlockSpec((None, tm, tn), lambda b, i, j: (b, i, j)),
            scratch_shapes=[pltpu.VMEM((tm, D), compute_dtype)],
        ),
        compiler_params=pltpu.CompilerParams(
            dimension_semantics=("parallel", "parallel", "arbitrary"),
            vmem_limit_bytes=vmem_limit,
        ),
    )(z_c, z_c, wt_s, b_s, bias1)

    if L_pad != L:
        out = out[:, :L, :L]
    return out


def _reference(z, w, b_lin, bias, *, hidden_dim=1000):
    h = jnp.einsum("bld,ed->ble", z, w) + b_lin           # nn.Linear: z @ W^T + b
    s = jnp.einsum("ble,bke->blk", h, z) / jnp.sqrt(jnp.float32(hidden_dim)) + bias
    return s


if __name__ == "__main__":
    def make_inputs(key, B, L, D):
        kz, kw, kb = jax.random.split(key, 3)
        z = jax.random.normal(kz, (B, L, D), dtype=jnp.float32)
        # Shapes from nn.Linear(embed_dim, embed_dim) and nn.Parameter(torch.zeros(1)).
        bound = 1.0 / math.sqrt(D)
        w = jax.random.uniform(kw, (D, D), jnp.float32, -bound, bound)
        b_lin = jax.random.uniform(kb, (D,), jnp.float32, -bound, bound)
        bias = jnp.zeros((), jnp.float32)
        return z, w, b_lin, bias

    # Small shape consistent with the module: batch=2, seq=8, embed_dim=32.
    z, w, b_lin, bias = make_inputs(jax.random.PRNGKey(0), 2, 8, 32)
    ref = _reference(z, w, b_lin, bias)

    # f32 compute path: tight check of the kernel structure.
    out = jax.block_until_ready(
        bilinear_contact_map(z, w, b_lin, bias, compute_dtype=jnp.float32))
    assert out.shape == ref.shape, out.shape
    assert jnp.allclose(out, ref, atol=1e-4, rtol=1e-4), float(jnp.max(jnp.abs(out - ref)))

    # Default bf16-MXU path: looser tolerance.
    out_bf = jax.block_until_ready(bilinear_contact_map(z, w, b_lin, bias))
    assert jnp.allclose(out_bf, ref, atol=5e-2, rtol=5e-2), float(jnp.max(jnp.abs(out_bf - ref)))

    # Shape that exercises L-padding and a multi-tile (i, j) grid with h-scratch reuse.
    z2, w2, b2, bias2 = make_inputs(jax.random.PRNGKey(1), 1, 300, 64)
    ref2 = _reference(z2, w2, b2, bias2)
    out2 = jax.block_until_ready(
        bilinear_contact_map(z2, w2, b2, bias2, compute_dtype=jnp.float32))
    assert out2.shape == ref2.shape, out2.shape
    assert jnp.allclose(out2, ref2, atol=1e-4, rtol=1e-4), float(jnp.max(jnp.abs(out2 - ref2)))

    print("KERNEL_OK")
</pallas_src>

<mosaic_0001>
module attributes {stable_mosaic.version = 11 : i64} {
  func.func @_bilinear_kernel(%arg0: i32, %arg1: i32, %arg2: i32, %arg3: memref<1x128x32xf32, #tpu.memory_space<vmem>>, %arg4: memref<1x128x32xf32, #tpu.memory_space<vmem>>, %arg5: memref<32x32xf32, #tpu.memory_space<vmem>>, %arg6: memref<1x32xf32, #tpu.memory_space<vmem>>, %arg7: memref<1xf32, #tpu.memory_space<smem>>, %arg8: memref<1x128x128xf32, #tpu.memory_space<vmem>>, %arg9: memref<128x32xf32, #tpu.memory_space<vmem>>) attributes {dimension_semantics = [#tpu.dimension_semantics<parallel>, #tpu.dimension_semantics<parallel>, #tpu.dimension_semantics<arbitrary>], iteration_bounds = array<i64: 2, 1, 1>, scalar_prefetch = 0 : i64, scratch_operands = 1 : i64, tpu.core_type = #tpu.core_type<tc>, window_params = [{transform_indices = @transform_0, window_bounds = array<i64: 1, 128, 32>}, {transform_indices = @transform_1, window_bounds = array<i64: 1, 128, 32>}, {pipeline_mode = #tpu.pipeline_mode<synchronous>, transform_indices = @transform_2, window_bounds = array<i64: 32, 32>}, {pipeline_mode = #tpu.pipeline_mode<synchronous>, transform_indices = @transform_3, window_bounds = array<i64: 1, 32>}, {transform_indices = @transform_4, window_bounds = array<i64: 1>}, {transform_indices = @transform_5, window_bounds = array<i64: 1, 128, 128>}]} {
    %c0_i32 = arith.constant 0 : i32
    %0 = arith.cmpi eq, %arg2, %c0_i32 : i32
    %1 = arith.extui %0 : i1 to i32
    %c0_i32_0 = arith.constant 0 : i32
    %2 = arith.cmpi ne, %1, %c0_i32_0 : i32
    scf.if %2 {
      %c0_9 = arith.constant 0 : index
      %c0_10 = arith.constant 0 : index
      %c0_11 = arith.constant 0 : index
      %13 = vector.load %arg3[%c0_9, %c0_10, %c0_11] : memref<1x128x32xf32, #tpu.memory_space<vmem>>, vector<1x128x32xf32>
      %14 = vector.shape_cast %13 : vector<1x128x32xf32> to vector<128x32xf32>
      %c0_12 = arith.constant 0 : index
      %c0_13 = arith.constant 0 : index
      %15 = vector.load %arg5[%c0_12, %c0_13] : memref<32x32xf32, #tpu.memory_space<vmem>>, vector<32x32xf32>
      %cst_14 = arith.constant dense<0.000000e+00> : vector<128x32xf32>
      %16 = tpu.matmul %14, %15, %cst_14 {dimension_numbers = #tpu.dot_dimension_numbers<[1], [0], [0], [1], [0, 0, 1, 1], [], []>} : vector<128x32xf32>, vector<32x32xf32>, vector<128x32xf32> -> vector<128x32xf32>
      %c0_15 = arith.constant 0 : index
      %c0_16 = arith.constant 0 : index
      %17 = vector.load %arg6[%c0_15, %c0_16] : memref<1x32xf32, #tpu.memory_space<vmem>>, vector<1x32xf32>
      %18 = vector.broadcast %17 : vector<1x32xf32> to vector<128x32xf32>
      %19 = arith.addf %16, %18 : vector<128x32xf32>
      %c0_17 = arith.constant 0 : index
      %c0_18 = arith.constant 0 : index
      %20 = vector.load %arg9[%c0_17, %c0_18] : memref<128x32xf32, #tpu.memory_space<vmem>>, vector<128x32xf32>
      tpu.vector_store %arg9[%c0_17, %c0_18], %19 {strides = array<i32>} : memref<128x32xf32, #tpu.memory_space<vmem>>, vector<128x32xf32>,
    } else {
    }
    %c0 = arith.constant 0 : index
    %c0_1 = arith.constant 0 : index
    %3 = vector.load %arg9[%c0, %c0_1] : memref<128x32xf32, #tpu.memory_space<vmem>>, vector<128x32xf32>
    %c0_2 = arith.constant 0 : index
    %c0_3 = arith.constant 0 : index
    %c0_4 = arith.constant 0 : index
    %4 = vector.load %arg4[%c0_2, %c0_3, %c0_4] : memref<1x128x32xf32, #tpu.memory_space<vmem>>, vector<1x128x32xf32>
    %5 = vector.shape_cast %4 : vector<1x128x32xf32> to vector<128x32xf32>
    %cst = arith.constant dense<0.000000e+00> : vector<128x128xf32>
    %6 = tpu.matmul %3, %5, %cst {dimension_numbers = #tpu.dot_dimension_numbers<[1], [1], [0], [0], [0, 0, 1, 0], [], []>} : vector<128x32xf32>, vector<128x32xf32>, vector<128x128xf32> -> vector<128x128xf32>
    %c0_5 = arith.constant 0 : index
    %7 = memref.load %arg7[%c0_5] : memref<1xf32, #tpu.memory_space<smem>>
    %8 = vector.broadcast %7 : f32 to vector<128x128xf32>
    %9 = arith.addf %6, %8 : vector<128x128xf32>
    %c0_6 = arith.constant 0 : index
    %c0_7 = arith.constant 0 : index
    %c0_8 = arith.constant 0 : index
    %10 = vector.load %arg8[%c0_6, %c0_7, %c0_8] : memref<1x128x128xf32, #tpu.memory_space<vmem>>, vector<1x128x128xf32>
    %11 = vector.shape_cast %10 : vector<1x128x128xf32> to vector<128x128xf32>
    %12 = vector.shape_cast %9 : vector<128x128xf32> to vector<1x128x128xf32>
    tpu.vector_store %arg8[%c0_6, %c0_7, %c0_8], %12 {strides = array<i32>} : memref<1x128x128xf32, #tpu.memory_space<vmem>>, vector<1x128x128xf32>,
    return
  }
  func.func @transform_0(%arg0: i32, %arg1: i32, %arg2: i32) -> (i32, i32, i32) {
    %c0_i32 = arith.constant 0 : i32
    %c0_i32_0 = arith.constant 0 : i32
    return %arg0, %arg1, %c0_i32 : i32, i32, i32
  }
  func.func @transform_1(%arg0: i32, %arg1: i32, %arg2: i32) -> (i32, i32, i32) {
    %c0_i32 = arith.constant 0 : i32
    %c0_i32_0 = arith.constant 0 : i32
    return %arg0, %arg2, %c0_i32 : i32, i32, i32
  }
  func.func @transform_2(%arg0: i32, %arg1: i32, %arg2: i32) -> (i32, i32) {
    %c0_i32 = arith.constant 0 : i32
    %c0_i32_0 = arith.constant 0 : i32
    %c0_i32_1 = arith.constant 0 : i32
    return %c0_i32, %c0_i32_0 : i32, i32
  }
  func.func @transform_3(%arg0: i32, %arg1: i32, %arg2: i32) -> (i32, i32) {
    %c0_i32 = arith.constant 0 : i32
    %c0_i32_0 = arith.constant 0 : i32
    %c0_i32_1 = arith.constant 0 : i32
    return %c0_i32, %c0_i32_0 : i32, i32
  }
  func.func @transform_4(%arg0: i32, %arg1: i32, %arg2: i32) -> i32 {
    %c0_i32 = arith.constant 0 : i32
    %c0_i32_0 = arith.constant 0 : i32
    return %c0_i32 : i32
  }
  func.func @transform_5(%arg0: i32, %arg1: i32, %arg2: i32) -> (i32, i32, i32) {
    %c0_i32 = arith.constant 0 : i32
    return %arg0, %arg1, %arg2 : i32, i32, i32
  }
}

</mosaic_0001>

<llo_original>
// kernel: tpu_custom_call.1
$region0: #{tpu_custom_call.1}
  #allocation0 [shape = 'u32[]', space=smem, size = 0x4, offset = 0x4, fixed_abs, tag = 'smem constant byte address 0x4 - core index']
  #allocation1 [shape = 'u32[144,128]{1,0:T(1,128)}', space=vmem, size = 0x12000, scoped, tag = 'internal scratch']
  #allocation2 [shape = 'f32[128,32]{1,0:T(8,128)}', space=vmem, size = 0x10000, scoped, tag = 'scratch operand']
  #allocation3 [shape = 'f32[1]{0:T(128)S(6)}', space=smem, size = 0x200, scoped, tag = 'scoped memory for tpu_custom_call.1']
  %s0 = inlined_call_operand.vmem [shape: f32[2,128,32], index: 0, kind: input, shape index: {}]
  %s1 = inlined_call_operand.vmem [shape: f32[2,128,32], index: 1, kind: input, shape index: {}]
  %s2 = inlined_call_operand.vmem [shape: f32[32,32], index: 2, kind: input, shape index: {}]
  %s3 = inlined_call_operand.vmem [shape: f32[1,32], index: 3, kind: input, shape index: {}]
  %s4 = inlined_call_operand.<no memory space> [shape: f32[1], index: 4, kind: input, shape index: {}]
  %s5 = inlined_call_operand.hbm [shape: f32[2,128,128], index: 5, kind: output, shape index: {}]
  %s6 = sld [smem:[#allocation0]]
  $region57: #{tpu_custom_call.1} parent=0
    _
  %s8 = ssub.s32 1, %s6
  %s9 = scalar_select 0, %s8, %s6
  %10 = sst [smem:[#allocation3]] %s4
  $region1: #{tpu_custom_call.1} parent=0
    #allocation4 [shape = 'u8[131072]{0}', space=vmem, size = 0x20000, scoped, tag = 'output window, operand 0']
    #allocation5 [shape = 's32[2]{0}', space=sflag, size = 0x8, scoped, tag = 'scoped memory for tpu_custom_call.1']
    %11 = vsyncpa [#allocation5], 0
    %s12 = scalar_lea.sflag [#allocation5], 1
    %13 = vsyncpa %s12, 0
    loop: start=0, step=1, limit=4
    $region2: #{tpu_custom_call.1} parent=1 // loop_pre_header
      _
    $region3: #{tpu_custom_call.1} parent=1 // loop_header
      %s15 = sphi 0, %s19
      %p16 = scmp.ge.s32.totalorder %s15, 4
      %s22 = sphi 0, %s41
      %s23 = sphi 0, %s37
      %s24 = sphi 0, %s33
      %s25 = sphi 0, %s22
      %s26 = sphi 0, %s23
      %s27 = sphi 0, %s24
      %s28 = sphi 0, %s25
      %s29 = sphi 0, %s26
      %s30 = sphi 0, %s27
      %s46 = sphi 0, %s48
      %s49 = sphi 0, %s46
      %s50 = sphi 0, %s49
      %s66 = sphi 0, %s50
      %s74 = sphi 0, %s76
      %s77 = sphi 0, %s74
      %s78 = sphi 0, %s77
      %s94 = sphi 0, %s78
      %s98 = sphi 0, %s98
      %s100 = sphi 0, %s98
      %s101 = sphi 0, %s100
      %s115 = sphi 0, %s101
      %s119 = sphi 0, %s119
      %s121 = sphi 0, %s119
      %s122 = sphi 0, %s121
      %s136 = sphi 0, %s122
      %s140 = sphi 0, %s140
      %s142 = sphi 0, %s140
      %s143 = sphi 0, %s142
      %s157 = sphi 0, %s143
      %s167 = sphi 0, %s169
      %s170 = sphi 0, %s167
      %s171 = sphi 0, %s170
      %s187 = sphi 0, %s171
    $region4: #{tpu_custom_call.1} parent=1 // loop_header_branch
      %18 = sbr.rel (%p16) target = $region8
    $region5: #{tpu_custom_call.1} parent=1 // loop_body
      %s20 = ssub.s32 %s15, 1
      %s21 = ssub.s32 %s15, 2
      %s31 = sadd.s32 1, %s24
      %p32 = scmp.ge.s32.totalorder %s31, 1
      %s33 = scalar_select %p32, 0, %s31
      %s34 = sadd.s32 1, %s23
      %s35 = scalar_select %p32, %s34, %s23
      %p36 = scmp.ge.s32.totalorder %s35, 1
      %s37 = scalar_select %p36, 0, %s35
      %s38 = sadd.s32 1, %s22
      %s39 = scalar_select %p36, %s38, %s22
      %p40 = scmp.ge.s32.totalorder %s39, 2
      %s41 = scalar_select %p40, 0, %s39
      %s42 = ssub.s32 %s22, %s41
      %s43 = ssub.s32 %s23, %s37
      %s44 = sor.u32 %s42, %s43
      %p45 = scmp.eq.s32.totalorder %s44, 0
      %s47 = sadd.s32 %s46, 1
      %s48 = scalar_select %p45, %s46, %s47
      %p51 = pneg %p45
      %p52 = scmp.eq.s32.totalorder %s15, 1
      %p53 = por %p51, %p52
      %p54 = scmp.ne.s32.totalorder %s46, %s49
      %p55 = scmp.eq.s32.totalorder %s15, 0
      %p56 = por %p54, %p55
      %p57 = scmp.ne.s32.totalorder %s46, %s49
      %p58 = scmp.eq.s32.totalorder %s20, 1
      %p59 = por %p57, %p58
      %p60 = scmp.ne.s32.totalorder %s49, %s50
      %p61 = scmp.eq.s32.totalorder %s20, 0
      %p62 = por %p60, %p61
      %p63 = scmp.ne.s32.totalorder %s49, %s50
      %p64 = scmp.eq.s32.totalorder %s21, 1
      %p65 = por %p63, %p64
      %p67 = scmp.ne.s32.totalorder %s50, %s66
      %p68 = scmp.eq.s32.totalorder %s21, 0
      %p69 = por %p67, %p68
      %s70 = ssub.s32 %s22, %s41
      %s71 = ssub.s32 %s24, %s33
      %s72 = sor.u32 %s70, %s71
      %p73 = scmp.eq.s32.totalorder %s72, 0
      %s75 = sadd.s32 %s74, 1
      %s76 = scalar_select %p73, %s74, %s75
      %p79 = pneg %p73
      %p80 = scmp.eq.s32.totalorder %s15, 1
      %p81 = por %p79, %p80
      %p82 = scmp.ne.s32.totalorder %s74, %s77
      %p83 = scmp.eq.s32.totalorder %s15, 0
      %p84 = por %p82, %p83
      %p85 = scmp.ne.s32.totalorder %s74, %s77
      %p86 = scmp.eq.s32.totalorder %s20, 1
      %p87 = por %p85, %p86
      %p88 = scmp.ne.s32.totalorder %s77, %s78
      %p89 = scmp.eq.s32.totalorder %s20, 0
      %p90 = por %p88, %p89
      %p91 = scmp.ne.s32.totalorder %s77, %s78
      %p92 = scmp.eq.s32.totalorder %s21, 1
      %p93 = por %p91, %p92
      %p95 = scmp.ne.s32.totalorder %s78, %s94
      %p96 = scmp.eq.s32.totalorder %s21, 0
      %p97 = por %p95, %p96
      %s99 = sadd.s32 %s98, 1
      %p102 = scmp.eq.s32.totalorder %s15, 1
      %p103 = scmp.ne.s32.totalorder %s98, %s100
      %p104 = scmp.eq.s32.totalorder %s15, 0
      %p105 = por %p103, %p104
      %p106 = scmp.ne.s32.totalorder %s98, %s100
      %p107 = scmp.eq.s32.totalorder %s20, 1
      %p108 = por %p106, %p107
      %p109 = scmp.ne.s32.totalorder %s100, %s101
      %p110 = scmp.eq.s32.totalorder %s20, 0
      %p111 = por %p109, %p110
      %p112 = scmp.ne.s32.totalorder %s100, %s101
      %p113 = scmp.eq.s32.totalorder %s21, 1
      %p114 = por %p112, %p113
      %p116 = scmp.ne.s32.totalorder %s101, %s115
      %p117 = scmp.eq.s32.totalorder %s21, 0
      %p118 = por %p116, %p117
      %s120 = sadd.s32 %s119, 1
      %p123 = scmp.eq.s32.totalorder %s15, 1
      %p124 = scmp.ne.s32.totalorder %s119, %s121
      %p125 = scmp.eq.s32.totalorder %s15, 0
      %p126 = por %p124, %p125
      %p127 = scmp.ne.s32.totalorder %s119, %s121
      %p128 = scmp.eq.s32.totalorder %s20, 1
      %p129 = por %p127, %p128
      %p130 = scmp.ne.s32.totalorder %s121, %s122
      %p131 = scmp.eq.s32.totalorder %s20, 0
      %p132 = por %p130, %p131
      %p133 = scmp.ne.s32.totalorder %s121, %s122
      %p134 = scmp.eq.s32.totalorder %s21, 1
      %p135 = por %p133, %p134
      %p137 = scmp.ne.s32.totalorder %s122, %s136
      %p138 = scmp.eq.s32.totalorder %s21, 0
      %p139 = por %p137, %p138
      %s141 = sadd.s32 %s140, 1
      %p144 = scmp.eq.s32.totalorder %s15, 1
      %p145 = scmp.ne.s32.totalorder %s140, %s142
      %p146 = scmp.eq.s32.totalorder %s15, 0
      %p147 = por %p145, %p146
      %p148 = scmp.ne.s32.totalorder %s140, %s142
      %p149 = scmp.eq.s32.totalorder %s20, 1
      %p150 = por %p148, %p149
      %p151 = scmp.ne.s32.totalorder %s142, %s143
      %p152 = scmp.eq.s32.totalorder %s20, 0
      %p153 = por %p151, %p152
      %p154 = scmp.ne.s32.totalorder %s142, %s143
      %p155 = scmp.eq.s32.totalorder %s21, 1
      %p156 = por %p154, %p155
      %p158 = scmp.ne.s32.totalorder %s143, %s157
      %p159 = scmp.eq.s32.totalorder %s21, 0
      %p160 = por %p158, %p159
      %s161 = ssub.s32 %s22, %s41
      %s162 = ssub.s32 %s23, %s37
      %s163 = sor.u32 %s161, %s162
      %s164 = ssub.s32 %s24, %s33
      %s165 = sor.u32 %s163, %s164
      %p166 = scmp.eq.s32.totalorder %s165, 0
      %s168 = sadd.s32 %s167, 1
      %s169 = scalar_select %p166, %s167, %s168
      %p172 = pneg %p166
      %p173 = scmp.eq.s32.totalorder %s15, 1
      %p174 = por %p172, %p173
      %p175 = scmp.ne.s32.totalorder %s167, %s170
      %p176 = scmp.eq.s32.totalorder %s15, 0
      %p177 = por %p175, %p176
      %p178 = scmp.ne.s32.totalorder %s167, %s170
      %p179 = scmp.eq.s32.totalorder %s20, 1
      %p180 = por %p178, %p179
      %p181 = scmp.ne.s32.totalorder %s170, %s171
      %p182 = scmp.eq.s32.totalorder %s20, 0
      %p183 = por %p181, %p182
      %p184 = scmp.ne.s32.totalorder %s170, %s171
      %p185 = scmp.eq.s32.totalorder %s21, 1
      %p186 = por %p184, %p185
      %p188 = scmp.ne.s32.totalorder %s171, %s187
      %p189 = scmp.eq.s32.totalorder %s21, 0
      %p190 = por %p188, %p189
      %p191 = scmp.le.s32.totalorder 1, %s15
      %p192 = scmp.lt.s32.totalorder %s15, 3
      %p193 = pnand %p191, %p192
      %p194 = pneg %p193
      // Predicated region
      $region9: #{tpu_custom_call.1} parent=5 // pred_check
        _
      $region10: #{tpu_custom_call.1} parent=5 // pred_check_branch
        %196 = sbr.rel (%p193) target = $region12
      $region11: #{tpu_custom_call.1} parent=5 // pred_region
        %s197 = ssub.s32 %s15, 1
        // Predicated region
        $region13: #{tpu_custom_call.1} parent=11 // pred_check
          %p198 = pneg %p111
        $region14: #{tpu_custom_call.1} parent=11 // pred_check_branch
          %200 = sbr.rel (%p198) target = $region16
        $region15: #{tpu_custom_call.1} parent=11 // pred_region
          _
        $region16: #{tpu_custom_call.1} parent=11 // pred_fallthru
          _
        // Predicated region
        $region17: #{tpu_custom_call.1} parent=11 // pred_check
          %p201 = pneg %p132
        $region18: #{tpu_custom_call.1} parent=11 // pred_check_branch
          %203 = sbr.rel (%p201) target = $region20
        $region19: #{tpu_custom_call.1} parent=11 // pred_region
          _
        $region20: #{tpu_custom_call.1} parent=11 // pred_fallthru
          _
        // Predicated region
        $region21: #{tpu_custom_call.1} parent=11 // pred_check
          %p204 = pneg %p153
        $region22: #{tpu_custom_call.1} parent=11 // pred_check_branch
          %206 = sbr.rel (%p204) target = $region24
        $region23: #{tpu_custom_call.1} parent=11 // pred_region
          _
        $region24: #{tpu_custom_call.1} parent=11 // pred_fallthru
          _
      $region12: #{tpu_custom_call.1} parent=5 // pred_fallthru
        _
      %p207 = scmp.lt.s32.totalorder %s15, 2
      // Predicated region
      $region25: #{tpu_custom_call.1} parent=5 // pred_check
        %p208 = pneg %p207
      $region26: #{tpu_custom_call.1} parent=5 // pred_check_branch
        %210 = sbr.rel (%p208) target = $region28
      $region27: #{tpu_custom_call.1} parent=5 // pred_region
        // Predicated region
        $region29: #{tpu_custom_call.1} parent=27 // pred_check
          %p211 = pneg %p56
        $region30: #{tpu_custom_call.1} parent=27 // pred_check_branch
          %213 = sbr.rel (%p211) target = $region32
        $region31: #{tpu_custom_call.1} parent=27 // pred_region
          %s214 = smul.u32 16, %s23
          %p215 = scmp.lt.s32.totalorder %s22, 1
          %s216 = scalar_select %p215, %s22, 1
          %p217 = scmp.lt.s32.totalorder %s214, 15
          %s218 = scalar_select %p217, %s214, 15
          %s219 = smul.addr %s216, 16
          %s220 = sadd.s32 %s218, %s219
          %s221 = smul.addr %s220, 8
          %s222 = scalar_lea.vmem %s0, %s221
          %s223 = smul.u32 16, %s23
        $region32: #{tpu_custom_call.1} parent=27 // pred_fallthru
          _
        // Predicated region
        $region33: #{tpu_custom_call.1} parent=27 // pred_check
          %p224 = pneg %p84
        $region34: #{tpu_custom_call.1} parent=27 // pred_check_branch
          %226 = sbr.rel (%p224) target = $region36
        $region35: #{tpu_custom_call.1} parent=27 // pred_region
          %s227 = smul.u32 16, %s24
          %p228 = scmp.lt.s32.totalorder %s22, 1
          %s229 = scalar_select %p228, %s22, 1
          %p230 = scmp.lt.s32.totalorder %s227, 15
          %s231 = scalar_select %p230, %s227, 15
          %s232 = smul.addr %s229, 16
          %s233 = sadd.s32 %s231, %s232
          %s234 = smul.addr %s233, 8
          %s235 = scalar_lea.vmem %s1, %s234
          %s236 = smul.u32 16, %s24
        $region36: #{tpu_custom_call.1} parent=27 // pred_fallthru
          _
      $region28: #{tpu_custom_call.1} parent=5 // pred_fallthru
        _
      %p237 = scmp.le.s32.totalorder 1, %s15
      %p238 = scmp.lt.s32.totalorder %s15, 3
      %p239 = pnand %p237, %p238
      %p240 = pneg %p239
      // Predicated region
      $region37: #{tpu_custom_call.1} parent=5 // pred_check
        _
      $region38: #{tpu_custom_call.1} parent=5 // pred_check_branch
        %242 = sbr.rel (%p239) target = $region40
      $region39: #{tpu_custom_call.1} parent=5 // pred_region
        %s243 = ssub.s32 %s15, 1
        %s244 = smul.u32 16, %s26
        %p245 = scmp.lt.s32.totalorder %s25, 1
        %s246 = scalar_select %p245, %s25, 1
        %p247 = scmp.lt.s32.totalorder %s244, 15
        %s248 = scalar_select %p247, %s244, 15
        %s249 = smul.addr %s246, 16
        %s250 = sadd.s32 %s248, %s249
        %s251 = smul.addr %s250, 8
        %s252 = scalar_lea.vmem %s0, %s251
        %p253 = pneg %p62
        %p254 = pneg %p59
        %s255 = smul.u32 16, %s27
        %p256 = scmp.lt.s32.totalorder %s25, 1
        %s257 = scalar_select %p256, %s25, 1
        %p258 = scmp.lt.s32.totalorder %s255, 15
        %s259 = scalar_select %p258, %s255, 15
        %s260 = smul.addr %s257, 16
        %s261 = sadd.s32 %s259, %s260
        %s262 = smul.addr %s261, 8
        %s263 = scalar_lea.vmem %s1, %s262
        %p264 = pneg %p90
        %p265 = pneg %p87
        %p266 = pneg %p111
        %p267 = pneg %p108
        %p268 = pneg %p132
        %p269 = pneg %p129
        %p270 = pneg %p153
        %p271 = pneg %p150
        %p272 = pneg %p183
        %p273 = pneg %p180
        %s274 = sand.u32 %s170, 1
        %s275 = scalar_lea.sflag [#allocation5], %s274
        %s276 = sand.u32 %s170, 1
        %s277 = smul.addr %s276, 128
        %s278 = scalar_lea.vmem [#allocation4], %s277
        %s279 = smul.u32 16, %s26
        %p280 = scmp.lt.s32.totalorder %s25, 1
        %s281 = scalar_select %p280, %s25, 1
        %p282 = scmp.lt.s32.totalorder %s279, 15
        %s283 = scalar_select %p282, %s279, 15
        %s284 = smul.addr %s281, 16
        %s285 = sadd.s32 %s283, %s284
        %s286 = smul.addr %s285, 8
        %s287 = scalar_lea.vmem %s0, %s286
        %s288 = smul.u32 16, %s26
        %s289 = smul.u32 16, %s27
        %p290 = scmp.lt.s32.totalorder %s25, 1
        %s291 = scalar_select %p290, %s25, 1
        %p292 = scmp.lt.s32.totalorder %s289, 15
        %s293 = scalar_select %p292, %s289, 15
        %s294 = smul.addr %s291, 16
        %s295 = sadd.s32 %s293, %s294
        %s296 = smul.addr %s295, 8
        %s297 = scalar_lea.vmem %s1, %s296
        %s298 = smul.u32 16, %s27
        %s299 = smul.u32 16, %s26
        %p300 = scmp.eq.s32.totalorder %s27, 0
        // Predicated region
        $region41: #{tpu_custom_call.1} parent=39 // pred_check
          %p301 = pneg %p300
        $region42: #{tpu_custom_call.1} parent=39 // pred_check_branch
          %303 = sbr.rel (%p301) target = $region44
        $region43: #{tpu_custom_call.1} parent=39 // pred_region
          %v304 = vld [vmem:[%s287] sm:$0xff]
          %v305 = vld [vmem:[%s287 + $0x8] sm:$0xff]
          %v306 = vld [vmem:[%s287 + $0x10] sm:$0xff]
          %v307 = vld [vmem:[%s287 + $0x18] sm:$0xff]
          %v308 = vld [vmem:[%s287 + $0x20] sm:$0xff]
          %v309 = vld [vmem:[%s287 + $0x28] sm:$0xff]
          %v310 = vld [vmem:[%s287 + $0x30] sm:$0xff]
          %v311 = vld [vmem:[%s287 + $0x38] sm:$0xff]
          %v312 = vld [vmem:[%s287 + $0x40] sm:$0xff]
          %v313 = vld [vmem:[%s287 + $0x48] sm:$0xff]
          %v314 = vld [vmem:[%s287 + $0x50] sm:$0xff]
          %v315 = vld [vmem:[%s287 + $0x58] sm:$0xff]
          %v316 = vld [vmem:[%s287 + $0x60] sm:$0xff]
          %v317 = vld [vmem:[%s287 + $0x68] sm:$0xff]
          %v318 = vld [vmem:[%s287 + $0x70] sm:$0xff]
          %v319 = vld [vmem:[%s287 + $0x78] sm:$0xff]
          %v320 = vld [vmem:[%s2] sm:$0xff]
          %v321 = vld [vmem:[%s2 + $0x8] sm:$0xff]
          %v322 = vld [vmem:[%s2 + $0x10] sm:$0xff]
          %v323 = vld [vmem:[%s2 + $0x18] sm:$0xff]
          %v324 = vld [vmem:[%s3] sm:$0x1]
          %v326 = vlaneseq
          %v327 = vshrl.u32 %v326, 7
          %v328 = vsub.s32 0, %v327
          %v329 = vrot.slane %v324, %v328
          %vm331 = vcmask 261120
          %v333 = vsel %vm331, %v304, 0
          %v336 = vsel %vm331, %v305, 0
          %v339 = vsel %vm331, %v306, 0
          %v342 = vsel %vm331, %v307, 0
          %v345 = vsel %vm331, %v308, 0
          %v348 = vsel %vm331, %v309, 0
          %v351 = vsel %vm331, %v310, 0
          %v354 = vsel %vm331, %v311, 0
          %v357 = vsel %vm331, %v312, 0
          %v360 = vsel %vm331, %v313, 0
          %v363 = vsel %vm331, %v314, 0
          %v366 = vsel %vm331, %v315, 0
          %v369 = vsel %vm331, %v316, 0
          %v372 = vsel %vm331, %v317, 0
          %v375 = vsel %vm331, %v318, 0
          %v378 = vsel %vm331, %v319, 0
          %380 = vmatprep.subr.mxu0 0.0
          %381 = vmatpush1.msra.mxu0 %v320
          %382 = vmatprep.subr.mxu0 0.0
          %383 = vmatpush1.msra.mxu0 %v321
          %384 = vmatprep.subr.mxu0 0.0
          %385 = vmatpush1.msra.mxu0 %v322
          %386 = vmatprep.subr.mxu0 0.0
          %387 = vmatpush1.msra.mxu0 %v323
          %388 = vmatprep.subr.mxu0 0.0
          %389 = vmatpush1.msra.mxu0 0.0
          %390 = vmatprep.subr.mxu0 0.0
          %391 = vmatpush1.msra.mxu0 0.0
          %392 = vmatprep.subr.mxu0 0.0
          %393 = vmatpush1.msra.mxu0 0.0
          %394 = vmatprep.subr.mxu0 0.0
          %395 = vmatpush1.msra.mxu0 0.0
          %396 = vmatprep.subr.mxu0 0.0
          %397 = vmatpush1.msra.mxu0 0.0
          %398 = vmatprep.subr.mxu0 0.0
          %399 = vmatpush1.msra.mxu0 0.0
          %400 = vmatprep.subr.mxu0 0.0
          %401 = vmatpush1.msra.mxu0 0.0
          %402 = vmatprep.subr.mxu0 0.0
          %403 = vmatpush1.msra.mxu0 0.0
          %404 = vmatprep.subr.mxu0 0.0
          %405 = vmatpush1.msra.mxu0 0.0
          %406 = vmatprep.subr.mxu0 0.0
          %407 = vmatpush1.msra.mxu0 0.0
          %408 = vmatprep.subr.mxu0 0.0
          %409 = vmatpush1.msra.mxu0 0.0
          %410 = vmatprep.subr.mxu0 0.0
          %411 = vmatpush1.msra.mxu0 0.0
          %412 = vmatprep.subr.mxu0 0.0
          %413 = vmatpush1.msra.mxu0 0.0
          %414 = vmatprep.subr.mxu0 0.0
          %415 = vmatpush1.msra.mxu0 0.0
          %416 = vmatprep.subr.mxu0 0.0
          %417 = vmatpush1.msra.mxu0 0.0
          %418 = vmatprep.subr.mxu0 0.0
          %419 = vmatpush1.msra.mxu0 0.0
          %420 = vmatprep.subr.mxu0 0.0
          %421 = vmatpush1.msra.mxu0 0.0
          %422 = vmatprep.subr.mxu0 0.0
          %423 = vmatpush1.msra.mxu0 0.0
          %424 = vmatprep.subr.mxu0 0.0
          %425 = vmatpush1.msra.mxu0 0.0
          %426 = vmatprep.subr.mxu0 0.0
          %427 = vmatpush1.msra.mxu0 0.0
          %428 = vmatprep.subr.mxu0 0.0
          %429 = vmatpush1.msra.mxu0 0.0
          %430 = vmatprep.subr.mxu0 0.0
          %431 = vmatpush1.msra.mxu0 0.0
          %432 = vmatprep.subr.mxu0 0.0
          %433 = vmatpush1.msra.mxu0 0.0
          %434 = vmatprep.subr.mxu0 0.0
          %435 = vmatpush1.msra.mxu0 0.0
          %436 = vmatprep.subr.mxu0 0.0
          %437 = vmatpush1.msra.mxu0 0.0
          %438 = vmatprep.subr.mxu0 0.0
          %439 = vmatpush1.msra.mxu0 0.0
          %440 = vmatprep.subr.mxu0 0.0
          %441 = vmatpush1.msra.mxu0 0.0
          %442 = vmatprep.subr.mxu0 0.0
          %443 = vmatpush1.msra.mxu0 0.0
          %444 = vmatprep.mubr.f32.mxu0 0.0
          %445 = vmatmul.mubr.f32.gmra.mrb[0].mxu0 %v333
          %v446 = vpop.f32.mrb[0].mxu0
          %v447 = vadd.f32 %v329, %v446
          %v448 = vpop.f32.mrb[0].mxu0
          %449 = vmatprep.mubr.f32.mxu0 0.0
          %450 = vmatmul.mubr.f32.gmra.mrb[0].mxu0 %v336
          %v451 = vpop.f32.mrb[0].mxu0
          %v452 = vadd.f32 %v329, %v451
          %v453 = vpop.f32.mrb[0].mxu0
          %454 = vmatprep.mubr.f32.mxu0 0.0
          %455 = vmatmul.mubr.f32.gmra.mrb[0].mxu0 %v339
          %v456 = vpop.f32.mrb[0].mxu0
          %v457 = vadd.f32 %v329, %v456
          %v458 = vpop.f32.mrb[0].mxu0
          %459 = vmatprep.mubr.f32.mxu0 0.0
          %460 = vmatmul.mubr.f32.gmra.mrb[0].mxu0 %v342
          %v461 = vpop.f32.mrb[0].mxu0
          %v462 = vadd.f32 %v329, %v461
          %v463 = vpop.f32.mrb[0].mxu0
          %464 = vmatprep.mubr.f32.mxu0 0.0
          %465 = vmatmul.mubr.f32.gmra.mrb[0].mxu0 %v345
          %v466 = vpop.f32.mrb[0].mxu0
          %v467 = vadd.f32 %v329, %v466
          %v468 = vpop.f32.mrb[0].mxu0
          %469 = vmatprep.mubr.f32.mxu0 0.0
          %470 = vmatmul.mubr.f32.gmra.mrb[0].mxu0 %v348
          %v471 = vpop.f32.mrb[0].mxu0
          %v472 = vadd.f32 %v329, %v471
          %v473 = vpop.f32.mrb[0].mxu0
          %474 = vmatprep.mubr.f32.mxu0 0.0
          %475 = vmatmul.mubr.f32.gmra.mrb[0].mxu0 %v351
          %v476 = vpop.f32.mrb[0].mxu0
          %v477 = vadd.f32 %v329, %v476
          %v478 = vpop.f32.mrb[0].mxu0
          %479 = vmatprep.mubr.f32.mxu0 0.0
          %480 = vmatmul.mubr.f32.gmra.mrb[0].mxu0 %v354
          %v481 = vpop.f32.mrb[0].mxu0
          %v482 = vadd.f32 %v329, %v481
          %v483 = vpop.f32.mrb[0].mxu0
          %484 = vmatprep.mubr.f32.mxu0 0.0
          %485 = vmatmul.mubr.f32.gmra.mrb[0].mxu0 %v357
          %v486 = vpop.f32.mrb[0].mxu0
          %v487 = vadd.f32 %v329, %v486
          %v488 = vpop.f32.mrb[0].mxu0
          %489 = vmatprep.mubr.f32.mxu0 0.0
          %490 = vmatmul.mubr.f32.gmra.mrb[0].mxu0 %v360
          %v491 = vpop.f32.mrb[0].mxu0
          %v492 = vadd.f32 %v329, %v491
          %v493 = vpop.f32.mrb[0].mxu0
          %494 = vmatprep.mubr.f32.mxu0 0.0
          %495 = vmatmul.mubr.f32.gmra.mrb[0].mxu0 %v363
          %v496 = vpop.f32.mrb[0].mxu0
          %v497 = vadd.f32 %v329, %v496
          %v498 = vpop.f32.mrb[0].mxu0
          %499 = vmatprep.mubr.f32.mxu0 0.0
          %500 = vmatmul.mubr.f32.gmra.mrb[0].mxu0 %v366
          %v501 = vpop.f32.mrb[0].mxu0
          %v502 = vadd.f32 %v329, %v501
          %v503 = vpop.f32.mrb[0].mxu0
          %504 = vmatprep.mubr.f32.mxu0 0.0
          %505 = vmatmul.mubr.f32.gmra.mrb[0].mxu0 %v369
          %v506 = vpop.f32.mrb[0].mxu0
          %v507 = vadd.f32 %v329, %v506
          %v508 = vpop.f32.mrb[0].mxu0
          %509 = vmatprep.mubr.f32.mxu0 0.0
          %510 = vmatmul.mubr.f32.gmra.mrb[0].mxu0 %v372
          %v511 = vpop.f32.mrb[0].mxu0
          %v512 = vadd.f32 %v329, %v511
          %v513 = vpop.f32.mrb[0].mxu0
          %514 = vmatprep.mubr.f32.mxu0 0.0
          %515 = vmatmul.mubr.f32.gmra.mrb[0].mxu0 %v375
          %v516 = vpop.f32.mrb[0].mxu0
          %v517 = vadd.f32 %v329, %v516
          %v518 = vpop.f32.mrb[0].mxu0
          %519 = vmatprep.mubr.f32.mxu0 0.0
          %520 = vmatmul.mubr.f32.gmra.mrb[0].mxu0 %v378
          %v521 = vpop.f32.mrb[0].mxu0
          %v522 = vadd.f32 %v329, %v521
          %v523 = vpop.f32.mrb[0].mxu0
          %524 = vdwg.mxu0
          %525 = vst.msk [vmem:[#allocation2] sm:$0xff] %vm331, %v447
          %526 = vst.msk [vmem:[#allocation2 + $0x8] sm:$0xff] %vm331, %v452
          %527 = vst.msk [vmem:[#allocation2 + $0x10] sm:$0xff] %vm331, %v457
          %528 = vst.msk [vmem:[#allocation2 + $0x18] sm:$0xff] %vm331, %v462
          %529 = vst.msk [vmem:[#allocation2 + $0x20] sm:$0xff] %vm331, %v467
          %530 = vst.msk [vmem:[#allocation2 + $0x28] sm:$0xff] %vm331, %v472
          %531 = vst.msk [vmem:[#allocation2 + $0x30] sm:$0xff] %vm331, %v477
          %532 = vst.msk [vmem:[#allocation2 + $0x38] sm:$0xff] %vm331, %v482
          %533 = vst.msk [vmem:[#allocation2 + $0x40] sm:$0xff] %vm331, %v487
          %534 = vst.msk [vmem:[#allocation2 + $0x48] sm:$0xff] %vm331, %v492
          %535 = vst.msk [vmem:[#allocation2 + $0x50] sm:$0xff] %vm331, %v497
          %536 = vst.msk [vmem:[#allocation2 + $0x58] sm:$0xff] %vm331, %v502
          %537 = vst.msk [vmem:[#allocation2 + $0x60] sm:$0xff] %vm331, %v507
          %538 = vst.msk [vmem:[#allocation2 + $0x68] sm:$0xff] %vm331, %v512
          %539 = vst.msk [vmem:[#allocation2 + $0x70] sm:$0xff] %vm331, %v517
          %540 = vst.msk [vmem:[#allocation2 + $0x78] sm:$0xff] %vm331, %v522
        $region44: #{tpu_custom_call.1} parent=39 // pred_fallthru
          _
        %v541 = vld [vmem:[#allocation2] sm:$0xff]
        %v542 = vld [vmem:[#allocation2 + $0x8] sm:$0xff]
        %v543 = vld [vmem:[#allocation2 + $0x10] sm:$0xff]
        %v544 = vld [vmem:[#allocation2 + $0x18] sm:$0xff]
        %v545 = vld [vmem:[#allocation2 + $0x20] sm:$0xff]
        %v546 = vld [vmem:[#allocation2 + $0x28] sm:$0xff]
        %v547 = vld [vmem:[#allocation2 + $0x30] sm:$0xff]
        %v548 = vld [vmem:[#allocation2 + $0x38] sm:$0xff]
        %v549 = vld [vmem:[#allocation2 + $0x40] sm:$0xff]
        %v550 = vld [vmem:[#allocation2 + $0x48] sm:$0xff]
        %v551 = vld [vmem:[#allocation2 + $0x50] sm:$0xff]
        %v552 = vld [vmem:[#allocation2 + $0x58] sm:$0xff]
        %v553 = vld [vmem:[#allocation2 + $0x60] sm:$0xff]
        %v554 = vld [vmem:[#allocation2 + $0x68] sm:$0xff]
        %v555 = vld [vmem:[#allocation2 + $0x70] sm:$0xff]
        %v556 = vld [vmem:[#allocation2 + $0x78] sm:$0xff]
        %v557 = vld [vmem:[%s297] sm:$0xff]
        %v558 = vld [vmem:[%s297 + $0x8] sm:$0xff]
        %v559 = vld [vmem:[%s297 + $0x10] sm:$0xff]
        %v560 = vld [vmem:[%s297 + $0x18] sm:$0xff]
        %v561 = vld [vmem:[%s297 + $0x20] sm:$0xff]
        %v562 = vld [vmem:[%s297 + $0x28] sm:$0xff]
        %v563 = vld [vmem:[%s297 + $0x30] sm:$0xff]
        %v564 = vld [vmem:[%s297 + $0x38] sm:$0xff]
        %v565 = vld [vmem:[%s297 + $0x40] sm:$0xff]
        %v566 = vld [vmem:[%s297 + $0x48] sm:$0xff]
        %v567 = vld [vmem:[%s297 + $0x50] sm:$0xff]
        %v568 = vld [vmem:[%s297 + $0x58] sm:$0xff]
        %v569 = vld [vmem:[%s297 + $0x60] sm:$0xff]
        %v570 = vld [vmem:[%s297 + $0x68] sm:$0xff]
        %v571 = vld [vmem:[%s297 + $0x70] sm:$0xff]
        %v572 = vld [vmem:[%s297 + $0x78] sm:$0xff]
        %s573 = sld [smem:[#allocation3]]
        %v574 = vstv %s573
        %vm575 = vcmask 261120
        %v577 = vsel %vm575, %v541, 0
        %v580 = vsel %vm575, %v542, 0
        %v583 = vsel %vm575, %v543, 0
        %v586 = vsel %vm575, %v544, 0
        %v589 = vsel %vm575, %v545, 0
        %v592 = vsel %vm575, %v546, 0
        %v595 = vsel %vm575, %v547, 0
        %v598 = vsel %vm575, %v548, 0
        %v601 = vsel %vm575, %v549, 0
        %v604 = vsel %vm575, %v550, 0
        %v607 = vsel %vm575, %v551, 0
        %v610 = vsel %vm575, %v552, 0
        %v613 = vsel %vm575, %v553, 0
        %v616 = vsel %vm575, %v554, 0
        %v619 = vsel %vm575, %v555, 0
        %v622 = vsel %vm575, %v556, 0
        %v625 = vsel %vm575, %v557, 0
        %v628 = vsel %vm575, %v558, 0
        %v631 = vsel %vm575, %v559, 0
        %v634 = vsel %vm575, %v560, 0
        %v637 = vsel %vm575, %v561, 0
        %v640 = vsel %vm575, %v562, 0
        %v643 = vsel %vm575, %v563, 0
        %v646 = vsel %vm575, %v564, 0
        %v649 = vsel %vm575, %v565, 0
        %v652 = vsel %vm575, %v566, 0
        %v655 = vsel %vm575, %v567, 0
        %v658 = vsel %vm575, %v568, 0
        %v661 = vsel %vm575, %v569, 0
        %v664 = vsel %vm575, %v570, 0
        %v667 = vsel %vm575, %v571, 0
        %v670 = vsel %vm575, %v572, 0
        %672 = vmatprep.subr.mxu0 0.0
        %673 = vmatpush1.xpose.msra.mxu0 %v625
        %674 = vmatprep.subr.mxu0 0.0
        %675 = vmatpush1.xpose.msra.mxu0 %v628
        %676 = vmatprep.subr.mxu0 0.0
        %677 = vmatpush1.xpose.msra.mxu0 %v631
        %678 = vmatprep.subr.mxu0 0.0
        %679 = vmatpush1.xpose.msra.mxu0 %v634
        %680 = vmatprep.subr.mxu0 0.0
        %681 = vmatpush1.xpose.msra.mxu0 %v637
        %682 = vmatprep.subr.mxu0 0.0
        %683 = vmatpush1.xpose.msra.mxu0 %v640
        %684 = vmatprep.subr.mxu0 0.0
        %685 = vmatpush1.xpose.msra.mxu0 %v643
        %686 = vmatprep.subr.mxu0 0.0
        %687 = vmatpush1.xpose.msra.mxu0 %v646
        %688 = vmatprep.subr.mxu0 0.0
        %689 = vmatpush1.xpose.msra.mxu0 %v649
        %690 = vmatprep.subr.mxu0 0.0
        %691 = vmatpush1.xpose.msra.mxu0 %v652
        %692 = vmatprep.subr.mxu0 0.0
        %693 = vmatpush1.xpose.msra.mxu0 %v655
        %694 = vmatprep.subr.mxu0 0.0
        %695 = vmatpush1.xpose.msra.mxu0 %v658
        %696 = vmatprep.subr.mxu0 0.0
        %697 = vmatpush1.xpose.msra.mxu0 %v661
        %698 = vmatprep.subr.mxu0 0.0
        %699 = vmatpush1.xpose.msra.mxu0 %v664
        %700 = vmatprep.subr.mxu0 0.0
        %701 = vmatpush1.xpose.msra.mxu0 %v667
        %702 = vmatprep.subr.mxu0 0.0
        %703 = vmatpush1.xpose.msra.mxu0 %v670
        %704 = vmatprep.subr.mxu0 0.0
        %705 = vmatpush1.xpose.msra.mxu0 0.0
        %706 = vmatprep.subr.mxu0 0.0
        %707 = vmatpush1.xpose.msra.mxu0 0.0
        %708 = vmatprep.subr.mxu0 0.0
        %709 = vmatpush1.xpose.msra.mxu0 0.0
        %710 = vmatprep.subr.mxu0 0.0
        %711 = vmatpush1.xpose.msra.mxu0 0.0
        %712 = vmatprep.subr.mxu0 0.0
        %713 = vmatpush1.xpose.msra.mxu0 0.0
        %714 = vmatprep.subr.mxu0 0.0
        %715 = vmatpush1.xpose.msra.mxu0 0.0
        %716 = vmatprep.subr.mxu0 0.0
        %717 = vmatpush1.xpose.msra.mxu0 0.0
        %718 = vmatprep.subr.mxu0 0.0
        %719 = vmatpush1.xpose.msra.mxu0 0.0
        %720 = vmatprep.subr.mxu0 0.0
        %721 = vmatpush1.xpose.msra.mxu0 0.0
        %722 = vmatprep.subr.mxu0 0.0
        %723 = vmatpush1.xpose.msra.mxu0 0.0
        %724 = vmatprep.subr.mxu0 0.0
        %725 = vmatpush1.xpose.msra.mxu0 0.0
        %726 = vmatprep.subr.mxu0 0.0
        %727 = vmatpush1.xpose.msra.mxu0 0.0
        %728 = vmatprep.subr.mxu0 0.0
        %729 = vmatpush1.xpose.msra.mxu0 0.0
        %730 = vmatprep.subr.mxu0 0.0
        %731 = vmatpush1.xpose.msra.mxu0 0.0
        %732 = vmatprep.subr.mxu0 0.0
        %733 = vmatpush1.xpose.msra.mxu0 0.0
        %734 = vmatprep.subr.mxu0 0.0
        %735 = vmatpush1.xpose.msra.mxu0 0.0
        %736 = vmatprep.mubr.f32.mxu0 0.0
        %737 = vmatmul.mubr.f32.gmra.mrb[0].mxu0 %v577
        %v738 = vpop.f32.mrb[0].mxu0
        %v739 = vadd.f32 %v574, %v738
        %v740 = vpop.f32.mrb[0].mxu0
        %741 = vmatprep.mubr.f32.mxu0 0.0
        %742 = vmatmul.mubr.f32.gmra.mrb[0].mxu0 %v580
        %v743 = vpop.f32.mrb[0].mxu0
        %v744 = vadd.f32 %v574, %v743
        %v745 = vpop.f32.mrb[0].mxu0
        %746 = vmatprep.mubr.f32.mxu0 0.0
        %747 = vmatmul.mubr.f32.gmra.mrb[0].mxu0 %v583
        %v748 = vpop.f32.mrb[0].mxu0
        %v749 = vadd.f32 %v574, %v748
        %v750 = vpop.f32.mrb[0].mxu0
        %751 = vmatprep.mubr.f32.mxu0 0.0
        %752 = vmatmul.mubr.f32.gmra.mrb[0].mxu0 %v586
        %v753 = vpop.f32.mrb[0].mxu0
        %v754 = vadd.f32 %v574, %v753
        %v755 = vpop.f32.mrb[0].mxu0
        %756 = vmatprep.mubr.f32.mxu0 0.0
        %757 = vmatmul.mubr.f32.gmra.mrb[0].mxu0 %v589
        %v758 = vpop.f32.mrb[0].mxu0
        %v759 = vadd.f32 %v574, %v758
        %v760 = vpop.f32.mrb[0].mxu0
        %761 = vmatprep.mubr.f32.mxu0 0.0
        %762 = vmatmul.mubr.f32.gmra.mrb[0].mxu0 %v592
        %v763 = vpop.f32.mrb[0].mxu0
        %v764 = vadd.f32 %v574, %v763
        %v765 = vpop.f32.mrb[0].mxu0
        %766 = vmatprep.mubr.f32.mxu0 0.0
        %767 = vmatmul.mubr.f32.gmra.mrb[0].mxu0 %v595
        %v768 = vpop.f32.mrb[0].mxu0
        %v769 = vadd.f32 %v574, %v768
        %v770 = vpop.f32.mrb[0].mxu0
        %771 = vmatprep.mubr.f32.mxu0 0.0
        %772 = vmatmul.mubr.f32.gmra.mrb[0].mxu0 %v598
        %v773 = vpop.f32.mrb[0].mxu0
        %v774 = vadd.f32 %v574, %v773
        %v775 = vpop.f32.mrb[0].mxu0
        %776 = vmatprep.mubr.f32.mxu0 0.0
        %777 = vmatmul.mubr.f32.gmra.mrb[0].mxu0 %v601
        %v778 = vpop.f32.mrb[0].mxu0
        %v779 = vadd.f32 %v574, %v778
        %v780 = vpop.f32.mrb[0].mxu0
        %781 = vmatprep.mubr.f32.mxu0 0.0
        %782 = vmatmul.mubr.f32.gmra.mrb[0].mxu0 %v604
        %v783 = vpop.f32.mrb[0].mxu0
        %v784 = vadd.f32 %v574, %v783
        %v785 = vpop.f32.mrb[0].mxu0
        %786 = vmatprep.mubr.f32.mxu0 0.0
        %787 = vmatmul.mubr.f32.gmra.mrb[0].mxu0 %v607
        %v788 = vpop.f32.mrb[0].mxu0
        %v789 = vadd.f32 %v574, %v788
        %v790 = vpop.f32.mrb[0].mxu0
        %791 = vmatprep.mubr.f32.mxu0 0.0
        %792 = vmatmul.mubr.f32.gmra.mrb[0].mxu0 %v610
        %v793 = vpop.f32.mrb[0].mxu0
        %v794 = vadd.f32 %v574, %v793
        %v795 = vpop.f32.mrb[0].mxu0
        %796 = vmatprep.mubr.f32.mxu0 0.0
        %797 = vmatmul.mubr.f32.gmra.mrb[0].mxu0 %v613
        %v798 = vpop.f32.mrb[0].mxu0
        %v799 = vadd.f32 %v574, %v798
        %v800 = vpop.f32.mrb[0].mxu0
        %801 = vmatprep.mubr.f32.mxu0 0.0
        %802 = vmatmul.mubr.f32.gmra.mrb[0].mxu0 %v616
        %v803 = vpop.f32.mrb[0].mxu0
        %v804 = vadd.f32 %v574, %v803
        %v805 = vpop.f32.mrb[0].mxu0
        %806 = vmatprep.mubr.f32.mxu0 0.0
        %807 = vmatmul.mubr.f32.gmra.mrb[0].mxu0 %v619
        %v808 = vpop.f32.mrb[0].mxu0
        %v809 = vadd.f32 %v574, %v808
        %v810 = vpop.f32.mrb[0].mxu0
        %811 = vmatprep.mubr.f32.mxu0 0.0
        %812 = vmatmul.mubr.f32.gmra.mrb[0].mxu0 %v622
        %v813 = vpop.f32.mrb[0].mxu0
        %v814 = vadd.f32 %v574, %v813
        %v815 = vpop.f32.mrb[0].mxu0
        %816 = vdwg.mxu0
        %817 = vst [vmem:[%s278] sm:$0xff] %v739
        %818 = vst [vmem:[%s278 + $0x8] sm:$0xff] %v744
        %819 = vst [vmem:[%s278 + $0x10] sm:$0xff] %v749
        %820 = vst [vmem:[%s278 + $0x18] sm:$0xff] %v754
        %821 = vst [vmem:[%s278 + $0x20] sm:$0xff] %v759
        %822 = vst [vmem:[%s278 + $0x28] sm:$0xff] %v764
        %823 = vst [vmem:[%s278 + $0x30] sm:$0xff] %v769
        %824 = vst [vmem:[%s278 + $0x38] sm:$0xff] %v774
        %825 = vst [vmem:[%s278 + $0x40] sm:$0xff] %v779
        %826 = vst [vmem:[%s278 + $0x48] sm:$0xff] %v784
        %827 = vst [vmem:[%s278 + $0x50] sm:$0xff] %v789
        %828 = vst [vmem:[%s278 + $0x58] sm:$0xff] %v794
        %829 = vst [vmem:[%s278 + $0x60] sm:$0xff] %v799
        %830 = vst [vmem:[%s278 + $0x68] sm:$0xff] %v804
        %831 = vst [vmem:[%s278 + $0x70] sm:$0xff] %v809
        %832 = vst [vmem:[%s278 + $0x78] sm:$0xff] %v814
        %s833 = sand.u32 %s170, 1
        %s834 = scalar_lea.sflag [#allocation5], %s833
        %s835 = sand.u32 %s170, 1
        %s836 = smul.addr %s835, 128
        %s837 = scalar_lea.vmem [#allocation4], %s836
        // Predicated region
        $region45: #{tpu_custom_call.1} parent=39 // pred_check
          %p838 = pneg %p180
        $region46: #{tpu_custom_call.1} parent=39 // pred_check_branch
          %840 = sbr.rel (%p838) target = $region48
        $region47: #{tpu_custom_call.1} parent=39 // pred_region
          %s841 = smul.u32 16, %s26
          %s843 = ssub.s32 2048, 2048
          %844 = vsyncadd %s834, %s843
          %s845 = sadd.s32 %s27, %s841
          %s846 = smul.addr %s25, 16
          %s847 = sadd.s32 %s845, %s846
          %s848 = smul.addr %s847, 128
          %s849 = scalar_lea.hbm %s5, %s848
          %s850 = sshll.u32 %s837, 4
          %s851 = int_to_ptr.vmem [resolvable:$true] %s850
          %856 = dma.vmem_to_hbm [thread:$0]  %s851, 2048, %s849, %s834, 128, 128, 8
        $region48: #{tpu_custom_call.1} parent=39 // pred_fallthru
          _
      $region40: #{tpu_custom_call.1} parent=5 // pred_fallthru
        _
      %p857 = scmp.le.s32.totalorder 2, %s15
      // Predicated region
      $region49: #{tpu_custom_call.1} parent=5 // pred_check
        %p858 = pneg %p857
      $region50: #{tpu_custom_call.1} parent=5 // pred_check_branch
        %860 = sbr.rel (%p858) target = $region52
      $region51: #{tpu_custom_call.1} parent=5 // pred_region
        %s861 = ssub.s32 %s15, 2
        // Predicated region
        $region53: #{tpu_custom_call.1} parent=51 // pred_check
          %p862 = pneg %p186
        $region54: #{tpu_custom_call.1} parent=51 // pred_check_branch
          %864 = sbr.rel (%p862) target = $region56
        $region55: #{tpu_custom_call.1} parent=51 // pred_region
          %s865 = sand.u32 %s171, 1
          %s866 = scalar_lea.sflag [#allocation5], %s865
          %s867 = sand.u32 %s171, 1
          %s868 = smul.addr %s867, 128
          %s869 = scalar_lea.vmem [#allocation4], %s868
          %870 = dma.done %s866, 2048
        $region56: #{tpu_custom_call.1} parent=51 // pred_fallthru
          _
      $region52: #{tpu_custom_call.1} parent=5 // pred_fallthru
        _
    $region6: #{tpu_custom_call.1} parent=1 // loop_footer
      %s19 = sadd.s32 1, %s15
    $region7: #{tpu_custom_call.1} parent=1 // loop_footer_branch
      %14 = sbr.rel target = $region3
    $region8: #{tpu_custom_call.1} parent=1 // loop_exit
      _
    %871 = vsyncpa [#allocation5], 1
    %s872 = scalar_lea.sflag [#allocation5], 1
    %873 = vsyncpa %s872, 1

</llo_original>
